<compile_context>
chip_gen: v5e
topology: v5e:2x2
jax: 0.10.0
libtpu: 0.0.40
codegen_flags: <defaults>
</compile_context>

<pallas_src>
import functools

import jax
import jax.numpy as jnp
from jax.experimental import pallas as pl
from jax.experimental.pallas import tpu as pltpu


def _cdiv(a, b):
    return -(-a // b)


def _round_up(a, b):
    return _cdiv(a, b) * b


def _gdl_decode_kernel(scale_ref, in_ref, out_ref):
    # scale_ref: (1,) f32 in SMEM -- roi_expand_param.
    # in_ref : (1, 7, block_r, 128) fields = x1, y1, x2, y2, d_left, d_right, score
    # out_ref: (1, 5, block_r, 128) fields = x1', left_y, x2', right_y, score
    scale = scale_ref[0]

    x1 = in_ref[0, 0]
    y1 = in_ref[0, 1]
    x2 = in_ref[0, 2]
    y2 = in_ref[0, 3]
    d_left = in_ref[0, 4]
    d_right = in_ref[0, 5]
    score = in_ref[0, 6]

    # zoom_boxes(rois, (scale, scale)): expand width/height around the center.
    cx = (x1 + x2) * 0.5
    cy = (y1 + y2) * 0.5
    half_w = (x2 - x1) * 0.5 * scale
    half_h = (y2 - y1) * 0.5 * scale
    zx1 = cx - half_w
    zx2 = cx + half_w
    zy2 = cy + half_h
    rois_height = 2.0 * half_h          # == zy2 - zy1 of the zoomed box

    # Direct per-field lane-dense slab stores (no cross-sublane concatenate).
    out_ref[0, 0] = zx1
    out_ref[0, 1] = zy2 + d_left * rois_height
    out_ref[0, 2] = zx2
    out_ref[0, 3] = zy2 + d_right * rois_height
    out_ref[0, 4] = score


@functools.partial(jax.jit, static_argnames=("block_rows",))
def ground_line_point_decode(batch_rois, rcnn_cls_pred, rcnn_reg_pred,
                             roi_expand_param=1.0, block_rows: int = 512):
    """JAX/Pallas equivalent of GroundLinePointDecoder.forward.

    Args:
      batch_rois:    (bs, N, >=4) float boxes [x1, y1, x2, y2, ...].
      rcnn_cls_pred: (bs*N, 1, 1, 1) NCHW label feature.
      rcnn_reg_pred: (bs*N, 2, 1, 1) NCHW regression feature.
      roi_expand_param: roi expansion scale (runtime value; no recompile).
      block_rows: max sublane-rows (of 128 ROIs each) per grid step.  Must be a
                  multiple of 8.  512 keeps the double-buffered block footprint
                  at ~6 MiB (safe for v5e/v6e/v7x scoped VMEM).
    Returns:
      (dict 'pred_gdl' -> per-batch list of dicts mimicking Lines2D/Points2D,
       decoded (bs, 5, N) array [x1', left_y, x2', right_y, score]).
    """
    assert block_rows % 8 == 0
    bs, n = batch_rois.shape[0], batch_rois.shape[1]

    if bs == 0 or n == 0:
        out_b = jnp.zeros((bs, 5, n), jnp.float32)
        return {"pred_gdl": []}, out_b

    rois = batch_rois[..., :4].astype(jnp.float32)                  # (bs, n, 4)
    reg = rcnn_reg_pred.astype(jnp.float32).reshape(bs, n, 2)
    cls = rcnn_cls_pred.astype(jnp.float32).reshape(bs, n)
    scale = jnp.asarray(roi_expand_param, jnp.float32).reshape(1)

    # Lane-dense pack: one XLA fusion producing (bs, 7, n) with the ROI index
    # on the fast (lane) axis.  Only the 7 real fields -- no pad slab.
    fields = jnp.stack(
        [rois[..., 0], rois[..., 1], rois[..., 2], rois[..., 3],
         reg[..., 0], reg[..., 1], cls], axis=1)                    # (bs, 7, n)

    # --- Grid shaping ------------------------------------------------------
    # Batch axis always contributes bs "parallel" steps (v7x megacore gets work
    # whenever bs >= 2).  Split the ROI axis into >=2 / >=4 blocks only once
    # the per-batch slab is big enough that pipelined DMA overlap beats the
    # ~0.35 us per-step overhead (small inputs stay single-block per batch).
    n_sub = _cdiv(n, 128)
    block_r = min(block_rows, _round_up(n_sub, 8))
    if n_sub >= 128:                       # >= ~16K ROIs per batch: >=2 blocks
        block_r = min(block_r, _round_up(_cdiv(n_sub, 2), 8))
    if n_sub >= 512:                       # >= ~64K ROIs per batch: >=4 blocks
        block_r = min(block_r, _round_up(_cdiv(n_sub, 4), 8))
    n_sub_pad = _round_up(n_sub, block_r)
    n_pad = n_sub_pad * 128

    if n_pad != n:
        fields = jnp.pad(fields, ((0, 0), (0, 0), (0, n_pad - n)))
    packed = fields.reshape(bs, 7, n_sub_pad, 128)

    out = pl.pallas_call(
        _gdl_decode_kernel,
        out_shape=jax.ShapeDtypeStruct((bs, 5, n_sub_pad, 128), jnp.float32),
        grid_spec=pltpu.PrefetchScalarGridSpec(
            num_scalar_prefetch=0,
            grid=(bs, n_sub_pad // block_r),
            in_specs=[
                pl.BlockSpec(memory_space=pltpu.MemorySpace.SMEM),   # scale
                pl.BlockSpec((1, 7, block_r, 128), lambda b, i: (b, 0, i, 0)),
            ],
            out_specs=pl.BlockSpec((1, 5, block_r, 128),
                                   lambda b, i: (b, 0, i, 0)),
        ),
        compiler_params=pltpu.CompilerParams(
            dimension_semantics=("parallel", "parallel")),
    )(scale, packed)                                # (bs, 5, n_sub_pad, 128)

    # Output is already batch-major: reshape is free; slice only if padded.
    out_b = out.reshape(bs, 5, n_pad)[:, :, :n]                     # (bs, 5, n)

    scores = out_b[:, 4, :]                                         # (bs, n)
    cls_idxs = jnp.zeros_like(scores)
    points0 = jnp.stack([out_b[:, 0, :], out_b[:, 1, :]], axis=-1)  # (bs, n, 2)
    points1 = jnp.stack([out_b[:, 2, :], out_b[:, 3, :]], axis=-1)  # (bs, n, 2)

    # TODO(synk): Points2D/Lines2D container classes and quantized-ROI
    # dequantize() have no JAX equivalent; plain dicts / float ROIs are used.
    result = [
        {"points0": {"points": points0[b], "cls_idxs": cls_idxs[b],
                     "scores": scores[b]},
         "points1": {"points": points1[b], "cls_idxs": cls_idxs[b],
                     "scores": scores[b]}}
        for b in range(bs)
    ]
    return {"pred_gdl": result}, out_b


def _reference(batch_rois, cls_pred, reg_pred, scale):
    """Pure-JAX reference replicating the PyTorch single_forward math."""
    bs, n = batch_rois.shape[0], batch_rois.shape[1]
    rois = batch_rois[..., :4].astype(jnp.float32)
    x1, y1, x2, y2 = [rois[..., i] for i in range(4)]
    cx, cy = (x1 + x2) / 2, (y1 + y2) / 2
    hw, hh = (x2 - x1) * scale / 2, (y2 - y1) * scale / 2
    zx1, zy1, zx2, zy2 = cx - hw, cy - hh, cx + hw, cy + hh
    h = zy2 - zy1
    label = cls_pred.reshape(bs, n)
    reg = reg_pred.reshape(bs, n, 2)
    left = zy2 + reg[..., 0] * h
    right = zy2 + reg[..., 1] * h
    return jnp.stack([zx1, left, zx2, right, label], axis=1)  # (bs, 5, N)


def _make_inputs(key, bs, n):
    k1, k2, k3, k4 = jax.random.split(key, 4)
    xy1 = jax.random.uniform(k1, (bs, n, 2), jnp.float32, 0.0, 200.0)
    wh = jax.random.uniform(k2, (bs, n, 2), jnp.float32, 5.0, 100.0)
    # rois carry 6 columns (x1, y1, x2, y2, score, cls); only [:4] are used.
    batch_rois = jnp.concatenate(
        [xy1, xy1 + wh, jnp.ones((bs, n, 2), jnp.float32)], axis=-1)
    rcnn_cls_pred = jax.random.uniform(k3, (bs * n, 1, 1, 1), jnp.float32)       # NCHW
    rcnn_reg_pred = jax.random.normal(k4, (bs * n, 2, 1, 1), jnp.float32) * 0.1  # NCHW
    return batch_rois, rcnn_cls_pred, rcnn_reg_pred


if __name__ == "__main__":
    roi_expand_param = 1.2

    # Case 1: N a multiple of 128, one ROI block per batch, grid (2, 1).
    rois, cls_p, reg_p = _make_inputs(jax.random.PRNGKey(0), bs=2, n=128)
    preds, out = ground_line_point_decode(rois, cls_p, reg_p, roi_expand_param)
    out = jax.block_until_ready(out)
    ref = _reference(rois, cls_p, reg_p, roi_expand_param)
    assert jnp.allclose(out, ref, atol=1e-4, rtol=1e-4), "case1 mismatch vs reference"
    assert len(preds["pred_gdl"]) == 2
    assert preds["pred_gdl"][0]["points0"]["points"].shape == (128, 2)

    # Case 2: N not a multiple of 128 -> lane-padding + final slice path.
    rois2, cls_p2, reg_p2 = _make_inputs(jax.random.PRNGKey(1), bs=3, n=100)
    _, out2 = ground_line_point_decode(rois2, cls_p2, reg_p2, roi_expand_param)
    out2 = jax.block_until_ready(out2)
    ref2 = _reference(rois2, cls_p2, reg_p2, roi_expand_param)
    assert jnp.allclose(out2, ref2, atol=1e-4, rtol=1e-4), "case2 mismatch vs reference"

    # Case 3: several 128-lane sublane-rows per batch, default block_rows.
    rois3, cls_p3, reg_p3 = _make_inputs(jax.random.PRNGKey(2), bs=2, n=2048)
    _, out3 = ground_line_point_decode(rois3, cls_p3, reg_p3, roi_expand_param)
    out3 = jax.block_until_ready(out3)
    ref3 = _reference(rois3, cls_p3, reg_p3, roi_expand_param)
    assert jnp.allclose(out3, ref3, atol=1e-4, rtol=1e-4), "case3 mismatch vs reference"

    # Case 4: exercise the multi-block-per-batch grid path (correctness-only
    # config; production keeps block_rows at the 256-512+ default).
    _, out4 = ground_line_point_decode(rois3, cls_p3, reg_p3, roi_expand_param,
                                       block_rows=8)
    out4 = jax.block_until_ready(out4)
    assert jnp.allclose(out4, ref3, atol=1e-4, rtol=1e-4), "case4 mismatch vs reference"

    print("KERNEL_OK")
</pallas_src>

<mosaic_0001>
module attributes {stable_mosaic.version = 11 : i64} {
  func.func @_gdl_decode_kernel(%arg0: i32, %arg1: i32, %arg2: memref<1xf32, #tpu.memory_space<smem>>, %arg3: memref<1x7x8x128xf32, #tpu.memory_space<vmem>>, %arg4: memref<1x5x8x128xf32, #tpu.memory_space<vmem>>) attributes {dimension_semantics = [#tpu.dimension_semantics<parallel>, #tpu.dimension_semantics<parallel>], iteration_bounds = array<i64: 2, 1>, scalar_prefetch = 0 : i64, scratch_operands = 0 : i64, tpu.core_type = #tpu.core_type<tc>, window_params = [{transform_indices = @transform_0, window_bounds = array<i64: 1>}, {transform_indices = @transform_1, window_bounds = array<i64: 1, 7, 8, 128>}, {transform_indices = @transform_2, window_bounds = array<i64: 1, 5, 8, 128>}]} {
    %c0 = arith.constant 0 : index
    %0 = memref.load %arg2[%c0] : memref<1xf32, #tpu.memory_space<smem>>
    %c0_0 = arith.constant 0 : index
    %c0_1 = arith.constant 0 : index
    %c0_2 = arith.constant 0 : index
    %c0_3 = arith.constant 0 : index
    %1 = vector.load %arg3[%c0_0, %c0_1, %c0_2, %c0_3] : memref<1x7x8x128xf32, #tpu.memory_space<vmem>>, vector<1x1x8x128xf32>
    %2 = vector.shape_cast %1 : vector<1x1x8x128xf32> to vector<8x128xf32>
    %c0_4 = arith.constant 0 : index
    %c1 = arith.constant 1 : index
    %c0_5 = arith.constant 0 : index
    %c0_6 = arith.constant 0 : index
    %3 = vector.load %arg3[%c0_4, %c1, %c0_5, %c0_6] : memref<1x7x8x128xf32, #tpu.memory_space<vmem>>, vector<1x1x8x128xf32>
    %4 = vector.shape_cast %3 : vector<1x1x8x128xf32> to vector<8x128xf32>
    %c0_7 = arith.constant 0 : index
    %c2 = arith.constant 2 : index
    %c0_8 = arith.constant 0 : index
    %c0_9 = arith.constant 0 : index
    %5 = vector.load %arg3[%c0_7, %c2, %c0_8, %c0_9] : memref<1x7x8x128xf32, #tpu.memory_space<vmem>>, vector<1x1x8x128xf32>
    %6 = vector.shape_cast %5 : vector<1x1x8x128xf32> to vector<8x128xf32>
    %c0_10 = arith.constant 0 : index
    %c3 = arith.constant 3 : index
    %c0_11 = arith.constant 0 : index
    %c0_12 = arith.constant 0 : index
    %7 = vector.load %arg3[%c0_10, %c3, %c0_11, %c0_12] : memref<1x7x8x128xf32, #tpu.memory_space<vmem>>, vector<1x1x8x128xf32>
    %8 = vector.shape_cast %7 : vector<1x1x8x128xf32> to vector<8x128xf32>
    %c0_13 = arith.constant 0 : index
    %c4 = arith.constant 4 : index
    %c0_14 = arith.constant 0 : index
    %c0_15 = arith.constant 0 : index
    %9 = vector.load %arg3[%c0_13, %c4, %c0_14, %c0_15] : memref<1x7x8x128xf32, #tpu.memory_space<vmem>>, vector<1x1x8x128xf32>
    %10 = vector.shape_cast %9 : vector<1x1x8x128xf32> to vector<8x128xf32>
    %c0_16 = arith.constant 0 : index
    %c5 = arith.constant 5 : index
    %c0_17 = arith.constant 0 : index
    %c0_18 = arith.constant 0 : index
    %11 = vector.load %arg3[%c0_16, %c5, %c0_17, %c0_18] : memref<1x7x8x128xf32, #tpu.memory_space<vmem>>, vector<1x1x8x128xf32>
    %12 = vector.shape_cast %11 : vector<1x1x8x128xf32> to vector<8x128xf32>
    %c0_19 = arith.constant 0 : index
    %c6 = arith.constant 6 : index
    %c0_20 = arith.constant 0 : index
    %c0_21 = arith.constant 0 : index
    %13 = vector.load %arg3[%c0_19, %c6, %c0_20, %c0_21] : memref<1x7x8x128xf32, #tpu.memory_space<vmem>>, vector<1x1x8x128xf32>
    %14 = vector.shape_cast %13 : vector<1x1x8x128xf32> to vector<8x128xf32>
    %15 = arith.addf %2, %6 : vector<8x128xf32>
    %cst = arith.constant 5.000000e-01 : f32
    %16 = vector.broadcast %cst : f32 to vector<8x128xf32>
    %17 = arith.mulf %15, %16 : vector<8x128xf32>
    %18 = arith.addf %4, %8 : vector<8x128xf32>
    %cst_22 = arith.constant 5.000000e-01 : f32
    %19 = vector.broadcast %cst_22 : f32 to vector<8x128xf32>
    %20 = arith.mulf %18, %19 : vector<8x128xf32>
    %21 = arith.subf %6, %2 : vector<8x128xf32>
    %cst_23 = arith.constant 5.000000e-01 : f32
    %22 = vector.broadcast %cst_23 : f32 to vector<8x128xf32>
    %23 = arith.mulf %21, %22 : vector<8x128xf32>
    %24 = vector.broadcast %0 : f32 to vector<8x128xf32>
    %25 = arith.mulf %23, %24 : vector<8x128xf32>
    %26 = arith.subf %8, %4 : vector<8x128xf32>
    %cst_24 = arith.constant 5.000000e-01 : f32
    %27 = vector.broadcast %cst_24 : f32 to vector<8x128xf32>
    %28 = arith.mulf %26, %27 : vector<8x128xf32>
    %29 = vector.broadcast %0 : f32 to vector<8x128xf32>
    %30 = arith.mulf %28, %29 : vector<8x128xf32>
    %31 = arith.subf %17, %25 : vector<8x128xf32>
    %32 = arith.addf %17, %25 : vector<8x128xf32>
    %33 = arith.addf %20, %30 : vector<8x128xf32>
    %cst_25 = arith.constant 2.000000e+00 : f32
    %34 = vector.broadcast %cst_25 : f32 to vector<8x128xf32>
    %35 = arith.mulf %34, %30 : vector<8x128xf32>
    %c0_26 = arith.constant 0 : index
    %c0_27 = arith.constant 0 : index
    %c0_28 = arith.constant 0 : index
    %c0_29 = arith.constant 0 : index
    %36 = vector.load %arg4[%c0_26, %c0_27, %c0_28, %c0_29] : memref<1x5x8x128xf32, #tpu.memory_space<vmem>>, vector<1x1x8x128xf32>
    %37 = vector.shape_cast %36 : vector<1x1x8x128xf32> to vector<8x128xf32>
    %38 = vector.shape_cast %31 : vector<8x128xf32> to vector<1x1x8x128xf32>
    tpu.vector_store %arg4[%c0_26, %c0_27, %c0_28, %c0_29], %38 {strides = array<i32>} : memref<1x5x8x128xf32, #tpu.memory_space<vmem>>, vector<1x1x8x128xf32>,
    %39 = arith.mulf %10, %35 : vector<8x128xf32>
    %40 = arith.addf %33, %39 : vector<8x128xf32>
    %c0_30 = arith.constant 0 : index
    %c1_31 = arith.constant 1 : index
    %c0_32 = arith.constant 0 : index
    %c0_33 = arith.constant 0 : index
    %41 = vector.load %arg4[%c0_30, %c1_31, %c0_32, %c0_33] : memref<1x5x8x128xf32, #tpu.memory_space<vmem>>, vector<1x1x8x128xf32>
    %42 = vector.shape_cast %41 : vector<1x1x8x128xf32> to vector<8x128xf32>
    %43 = vector.shape_cast %40 : vector<8x128xf32> to vector<1x1x8x128xf32>
    tpu.vector_store %arg4[%c0_30, %c1_31, %c0_32, %c0_33], %43 {strides = array<i32>} : memref<1x5x8x128xf32, #tpu.memory_space<vmem>>, vector<1x1x8x128xf32>,
    %c0_34 = arith.constant 0 : index
    %c2_35 = arith.constant 2 : index
    %c0_36 = arith.constant 0 : index
    %c0_37 = arith.constant 0 : index
    %44 = vector.load %arg4[%c0_34, %c2_35, %c0_36, %c0_37] : memref<1x5x8x128xf32, #tpu.memory_space<vmem>>, vector<1x1x8x128xf32>
    %45 = vector.shape_cast %44 : vector<1x1x8x128xf32> to vector<8x128xf32>
    %46 = vector.shape_cast %32 : vector<8x128xf32> to vector<1x1x8x128xf32>
    tpu.vector_store %arg4[%c0_34, %c2_35, %c0_36, %c0_37], %46 {strides = array<i32>} : memref<1x5x8x128xf32, #tpu.memory_space<vmem>>, vector<1x1x8x128xf32>,
    %47 = arith.mulf %12, %35 : vector<8x128xf32>
    %48 = arith.addf %33, %47 : vector<8x128xf32>
    %c0_38 = arith.constant 0 : index
    %c3_39 = arith.constant 3 : index
    %c0_40 = arith.constant 0 : index
    %c0_41 = arith.constant 0 : index
    %49 = vector.load %arg4[%c0_38, %c3_39, %c0_40, %c0_41] : memref<1x5x8x128xf32, #tpu.memory_space<vmem>>, vector<1x1x8x128xf32>
    %50 = vector.shape_cast %49 : vector<1x1x8x128xf32> to vector<8x128xf32>
    %51 = vector.shape_cast %48 : vector<8x128xf32> to vector<1x1x8x128xf32>
    tpu.vector_store %arg4[%c0_38, %c3_39, %c0_40, %c0_41], %51 {strides = array<i32>} : memref<1x5x8x128xf32, #tpu.memory_space<vmem>>, vector<1x1x8x128xf32>,
    %c0_42 = arith.constant 0 : index
    %c4_43 = arith.constant 4 : index
    %c0_44 = arith.constant 0 : index
    %c0_45 = arith.constant 0 : index
    %52 = vector.load %arg4[%c0_42, %c4_43, %c0_44, %c0_45] : memref<1x5x8x128xf32, #tpu.memory_space<vmem>>, vector<1x1x8x128xf32>
    %53 = vector.shape_cast %52 : vector<1x1x8x128xf32> to vector<8x128xf32>
    %54 = vector.shape_cast %14 : vector<8x128xf32> to vector<1x1x8x128xf32>
    tpu.vector_store %arg4[%c0_42, %c4_43, %c0_44, %c0_45], %54 {strides = array<i32>} : memref<1x5x8x128xf32, #tpu.memory_space<vmem>>, vector<1x1x8x128xf32>,
    return
  }
  func.func @transform_0(%arg0: i32, %arg1: i32) -> i32 {
    %c0_i32 = arith.constant 0 : i32
    %c0_i32_0 = arith.constant 0 : i32
    return %c0_i32 : i32
  }
  func.func @transform_1(%arg0: i32, %arg1: i32) -> (i32, i32, i32, i32) {
    %c0_i32 = arith.constant 0 : i32
    %c0_i32_0 = arith.constant 0 : i32
    %c0_i32_1 = arith.constant 0 : i32
    return %arg0, %c0_i32, %arg1, %c0_i32_0 : i32, i32, i32, i32
  }
  func.func @transform_2(%arg0: i32, %arg1: i32) -> (i32, i32, i32, i32) {
    %c0_i32 = arith.constant 0 : i32
    %c0_i32_0 = arith.constant 0 : i32
    %c0_i32_1 = arith.constant 0 : i32
    return %arg0, %c0_i32, %arg1, %c0_i32_0 : i32, i32, i32, i32
  }
}

</mosaic_0001>

<llo_original>
// kernel: ground_line_point_decode.1
$region0: #{ground_line_point_decode.1}
  #allocation0 [shape = 'u32[]', space=smem, size = 0x4, offset = 0x4, fixed_abs, tag = 'smem constant byte address 0x4 - core index']
  #allocation1 [shape = 'u32[72,128]{1,0:T(1,128)}', space=vmem, size = 0x9000, scoped, tag = 'internal scratch']
  #allocation2 [shape = 'f32[1]{0:T(128)S(6)}', space=smem, size = 0x200, scoped, tag = 'scoped memory for ground_line_point_decode.1']
  %s0 = inlined_call_operand.<no memory space> [shape: f32[1], index: 0, kind: input, shape index: {}]
  %s1 = inlined_call_operand.vmem [shape: f32[2,7,8,128], index: 1, kind: input, shape index: {}]
  %s2 = inlined_call_operand.vmem [shape: f32[2,5,8,128], index: 2, kind: output, shape index: {}]
  %s3 = sld [smem:[#allocation0]]
  $region41: #{ground_line_point_decode.1} parent=0
    _
  %s5 = ssub.s32 1, %s3
  %s6 = scalar_select 0, %s5, %s3
  %7 = sst [smem:[#allocation2]] %s0
  loop: start=0, step=1, limit=4
  $region2: #{ground_line_point_decode.1} parent=0 // loop_pre_header
    _
  $region3: #{ground_line_point_decode.1} parent=0 // loop_header
    %s9 = sphi 0, %s13
    %p10 = scmp.ge.s32.totalorder %s9, 4
    %s16 = sphi 0, %s28
    %s17 = sphi 0, %s24
    %s18 = sphi 0, %s16
    %s19 = sphi 0, %s17
    %s20 = sphi 0, %s18
    %s21 = sphi 0, %s19
    %s29 = sphi 0, %s29
    %s31 = sphi 0, %s29
    %s32 = sphi 0, %s31
    %s46 = sphi 0, %s32
    %s54 = sphi 0, %s56
    %s57 = sphi 0, %s54
    %s58 = sphi 0, %s57
    %s74 = sphi 0, %s58
    %s82 = sphi 0, %s84
    %s85 = sphi 0, %s82
    %s86 = sphi 0, %s85
    %s102 = sphi 0, %s86
  $region4: #{ground_line_point_decode.1} parent=0 // loop_header_branch
    %12 = sbr.rel (%p10) target = $region8
  $region5: #{ground_line_point_decode.1} parent=0 // loop_body
    %s14 = ssub.s32 %s9, 1
    %s15 = ssub.s32 %s9, 2
    %s22 = sadd.s32 1, %s17
    %p23 = scmp.ge.s32.totalorder %s22, 1
    %s24 = scalar_select %p23, 0, %s22
    %s25 = sadd.s32 1, %s16
    %s26 = scalar_select %p23, %s25, %s16
    %p27 = scmp.ge.s32.totalorder %s26, 2
    %s28 = scalar_select %p27, 0, %s26
    %s30 = sadd.s32 %s29, 1
    %p33 = scmp.eq.s32.totalorder %s9, 1
    %p34 = scmp.ne.s32.totalorder %s29, %s31
    %p35 = scmp.eq.s32.totalorder %s9, 0
    %p36 = por %p34, %p35
    %p37 = scmp.ne.s32.totalorder %s29, %s31
    %p38 = scmp.eq.s32.totalorder %s14, 1
    %p39 = por %p37, %p38
    %p40 = scmp.ne.s32.totalorder %s31, %s32
    %p41 = scmp.eq.s32.totalorder %s14, 0
    %p42 = por %p40, %p41
    %p43 = scmp.ne.s32.totalorder %s31, %s32
    %p44 = scmp.eq.s32.totalorder %s15, 1
    %p45 = por %p43, %p44
    %p47 = scmp.ne.s32.totalorder %s32, %s46
    %p48 = scmp.eq.s32.totalorder %s15, 0
    %p49 = por %p47, %p48
    %s50 = ssub.s32 %s16, %s28
    %s51 = ssub.s32 %s17, %s24
    %s52 = sor.u32 %s50, %s51
    %p53 = scmp.eq.s32.totalorder %s52, 0
    %s55 = sadd.s32 %s54, 1
    %s56 = scalar_select %p53, %s54, %s55
    %p59 = pneg %p53
    %p60 = scmp.eq.s32.totalorder %s9, 1
    %p61 = por %p59, %p60
    %p62 = scmp.ne.s32.totalorder %s54, %s57
    %p63 = scmp.eq.s32.totalorder %s9, 0
    %p64 = por %p62, %p63
    %p65 = scmp.ne.s32.totalorder %s54, %s57
    %p66 = scmp.eq.s32.totalorder %s14, 1
    %p67 = por %p65, %p66
    %p68 = scmp.ne.s32.totalorder %s57, %s58
    %p69 = scmp.eq.s32.totalorder %s14, 0
    %p70 = por %p68, %p69
    %p71 = scmp.ne.s32.totalorder %s57, %s58
    %p72 = scmp.eq.s32.totalorder %s15, 1
    %p73 = por %p71, %p72
    %p75 = scmp.ne.s32.totalorder %s58, %s74
    %p76 = scmp.eq.s32.totalorder %s15, 0
    %p77 = por %p75, %p76
    %s78 = ssub.s32 %s16, %s28
    %s79 = ssub.s32 %s17, %s24
    %s80 = sor.u32 %s78, %s79
    %p81 = scmp.eq.s32.totalorder %s80, 0
    %s83 = sadd.s32 %s82, 1
    %s84 = scalar_select %p81, %s82, %s83
    %p87 = pneg %p81
    %p88 = scmp.eq.s32.totalorder %s9, 1
    %p89 = por %p87, %p88
    %p90 = scmp.ne.s32.totalorder %s82, %s85
    %p91 = scmp.eq.s32.totalorder %s9, 0
    %p92 = por %p90, %p91
    %p93 = scmp.ne.s32.totalorder %s82, %s85
    %p94 = scmp.eq.s32.totalorder %s14, 1
    %p95 = por %p93, %p94
    %p96 = scmp.ne.s32.totalorder %s85, %s86
    %p97 = scmp.eq.s32.totalorder %s14, 0
    %p98 = por %p96, %p97
    %p99 = scmp.ne.s32.totalorder %s85, %s86
    %p100 = scmp.eq.s32.totalorder %s15, 1
    %p101 = por %p99, %p100
    %p103 = scmp.ne.s32.totalorder %s86, %s102
    %p104 = scmp.eq.s32.totalorder %s15, 0
    %p105 = por %p103, %p104
    %p106 = scmp.le.s32.totalorder 1, %s9
    %p107 = scmp.lt.s32.totalorder %s9, 3
    %p108 = pnand %p106, %p107
    %p109 = pneg %p108
    // Predicated region
    $region9: #{ground_line_point_decode.1} parent=5 // pred_check
      _
    $region10: #{ground_line_point_decode.1} parent=5 // pred_check_branch
      %111 = sbr.rel (%p108) target = $region12
    $region11: #{ground_line_point_decode.1} parent=5 // pred_region
      %s112 = ssub.s32 %s9, 1
      // Predicated region
      $region13: #{ground_line_point_decode.1} parent=11 // pred_check
        %p113 = pneg %p42
      $region14: #{ground_line_point_decode.1} parent=11 // pred_check_branch
        %115 = sbr.rel (%p113) target = $region16
      $region15: #{ground_line_point_decode.1} parent=11 // pred_region
        _
      $region16: #{ground_line_point_decode.1} parent=11 // pred_fallthru
        _
    $region12: #{ground_line_point_decode.1} parent=5 // pred_fallthru
      _
    %p116 = scmp.lt.s32.totalorder %s9, 2
    // Predicated region
    $region17: #{ground_line_point_decode.1} parent=5 // pred_check
      %p117 = pneg %p116
    $region18: #{ground_line_point_decode.1} parent=5 // pred_check_branch
      %119 = sbr.rel (%p117) target = $region20
    $region19: #{ground_line_point_decode.1} parent=5 // pred_region
      // Predicated region
      $region21: #{ground_line_point_decode.1} parent=19 // pred_check
        %p120 = pneg %p64
      $region22: #{ground_line_point_decode.1} parent=19 // pred_check_branch
        %122 = sbr.rel (%p120) target = $region24
      $region23: #{ground_line_point_decode.1} parent=19 // pred_region
        %p123 = scmp.lt.s32.totalorder %s16, 1
        %s124 = scalar_select %p123, %s16, 1
        %p125 = scmp.lt.s32.totalorder %s17, 0
        %s126 = scalar_select %p125, %s17, 0
        %s127 = smul.addr %s124, 7
        %s128 = sadd.s32 %s126, %s127
        %s129 = smul.addr %s128, 8
        %s130 = scalar_lea.vmem %s1, %s129
      $region24: #{ground_line_point_decode.1} parent=19 // pred_fallthru
        _
    $region20: #{ground_line_point_decode.1} parent=5 // pred_fallthru
      _
    %p131 = scmp.le.s32.totalorder 1, %s9
    %p132 = scmp.lt.s32.totalorder %s9, 3
    %p133 = pnand %p131, %p132
    %p134 = pneg %p133
    // Predicated region
    $region25: #{ground_line_point_decode.1} parent=5 // pred_check
      _
    $region26: #{ground_line_point_decode.1} parent=5 // pred_check_branch
      %136 = sbr.rel (%p133) target = $region28
    $region27: #{ground_line_point_decode.1} parent=5 // pred_region
      %s137 = ssub.s32 %s9, 1
      %p138 = pneg %p42
      %p139 = pneg %p39
      %p140 = scmp.lt.s32.totalorder %s18, 1
      %s141 = scalar_select %p140, %s18, 1
      %p142 = scmp.lt.s32.totalorder %s19, 0
      %s143 = scalar_select %p142, %s19, 0
      %s144 = smul.addr %s141, 7
      %s145 = sadd.s32 %s143, %s144
      %s146 = smul.addr %s145, 8
      %s147 = scalar_lea.vmem %s1, %s146
      %p148 = pneg %p70
      %p149 = pneg %p67
      %p150 = pneg %p98
      %p151 = pneg %p95
      %p152 = scmp.lt.s32.totalorder %s18, 1
      %s153 = scalar_select %p152, %s18, 1
      %p154 = scmp.lt.s32.totalorder %s19, 0
      %s155 = scalar_select %p154, %s19, 0
      %s156 = smul.addr %s153, 5
      %s157 = sadd.s32 %s155, %s156
      %s158 = smul.addr %s157, 8
      %s159 = scalar_lea.vmem %s2, %s158
      %p160 = scmp.lt.s32.totalorder %s18, 1
      %s161 = scalar_select %p160, %s18, 1
      %p162 = scmp.lt.s32.totalorder %s19, 0
      %s163 = scalar_select %p162, %s19, 0
      %s164 = smul.addr %s161, 7
      %s165 = sadd.s32 %s163, %s164
      %s166 = smul.addr %s165, 8
      %s167 = scalar_lea.vmem %s1, %s166
      %p168 = scmp.lt.s32.totalorder %s18, 1
      %s169 = scalar_select %p168, %s18, 1
      %p170 = scmp.lt.s32.totalorder %s19, 0
      %s171 = scalar_select %p170, %s19, 0
      %s172 = smul.addr %s169, 5
      %s173 = sadd.s32 %s171, %s172
      %s174 = smul.addr %s173, 8
      %s175 = scalar_lea.vmem %s2, %s174
      %s176 = sld [smem:[#allocation2]]
      %v177 = vld [vmem:[%s167] sm:$0xff]
      %s178 = scalar_lea.vmem %s167, 8
      %v179 = vld [vmem:[%s178] sm:$0xff]
      %s180 = scalar_lea.vmem %s167, 16
      %v181 = vld [vmem:[%s180] sm:$0xff]
      %s182 = scalar_lea.vmem %s167, 24
      %v183 = vld [vmem:[%s182] sm:$0xff]
      %s184 = scalar_lea.vmem %s167, 32
      %v185 = vld [vmem:[%s184] sm:$0xff]
      %s186 = scalar_lea.vmem %s167, 40
      %v187 = vld [vmem:[%s186] sm:$0xff]
      %s188 = scalar_lea.vmem %s167, 48
      %v189 = vld [vmem:[%s188] sm:$0xff]
      %v190 = vadd.f32 %v177, %v181
      %v191 = vmul.f32 %v190, 0.5
      %v192 = vadd.f32 %v179, %v183
      %v193 = vmul.f32 %v192, 0.5
      %v194 = vsub.f32 %v181, %v177
      %v195 = vmul.f32 %v194, 0.5
      %v196 = vstv %s176
      %v197 = vmul.f32 %v195, %v196
      %v198 = vsub.f32 %v183, %v179
      %v199 = vmul.f32 %v198, 0.5
      %v200 = vmul.f32 %v199, %v196
      %v201 = vsub.f32 %v191, %v197
      %v202 = vadd.f32 %v191, %v197
      %v203 = vadd.f32 %v193, %v200
      %v204 = vmul.f32 %v200, 2.0
      %205 = vst [vmem:[%s175] sm:$0xff] %v201
      %v206 = vmul.f32 %v185, %v204
      %v207 = vadd.f32 %v203, %v206
      %s208 = scalar_lea.vmem %s175, 8
      %209 = vst [vmem:[%s208] sm:$0xff] %v207
      %s210 = scalar_lea.vmem %s175, 16
      %211 = vst [vmem:[%s210] sm:$0xff] %v202
      %v212 = vmul.f32 %v187, %v204
      %v213 = vadd.f32 %v203, %v212
      %s214 = scalar_lea.vmem %s175, 24
      %215 = vst [vmem:[%s214] sm:$0xff] %v213
      %s216 = scalar_lea.vmem %s175, 32
      %217 = vst [vmem:[%s216] sm:$0xff] %v189
      %p218 = scmp.lt.s32.totalorder %s18, 1
      %s219 = scalar_select %p218, %s18, 1
      %p220 = scmp.lt.s32.totalorder %s19, 0
      %s221 = scalar_select %p220, %s19, 0
      %s222 = smul.addr %s219, 5
      %s223 = sadd.s32 %s221, %s222
      %s224 = smul.addr %s223, 8
      %s225 = scalar_lea.vmem %s2, %s224
      // Predicated region
      $region29: #{ground_line_point_decode.1} parent=27 // pred_check
        %p226 = pneg %p95
      $region30: #{ground_line_point_decode.1} parent=27 // pred_check_branch
        %228 = sbr.rel (%p226) target = $region32
      $region31: #{ground_line_point_decode.1} parent=27 // pred_region
        _
      $region32: #{ground_line_point_decode.1} parent=27 // pred_fallthru
        _
    $region28: #{ground_line_point_decode.1} parent=5 // pred_fallthru
      _
    %p229 = scmp.le.s32.totalorder 2, %s9
    // Predicated region
    $region33: #{ground_line_point_decode.1} parent=5 // pred_check
      %p230 = pneg %p229
    $region34: #{ground_line_point_decode.1} parent=5 // pred_check_branch
      %232 = sbr.rel (%p230) target = $region36
    $region35: #{ground_line_point_decode.1} parent=5 // pred_region
      %s233 = ssub.s32 %s9, 2
      // Predicated region
      $region37: #{ground_line_point_decode.1} parent=35 // pred_check
        %p234 = pneg %p101
      $region38: #{ground_line_point_decode.1} parent=35 // pred_check_branch
        %236 = sbr.rel (%p234) target = $region40
      $region39: #{ground_line_point_decode.1} parent=35 // pred_region
        %p237 = scmp.lt.s32.totalorder %s20, 1
        %s238 = scalar_select %p237, %s20, 1
        %p239 = scmp.lt.s32.totalorder %s21, 0
        %s240 = scalar_select %p239, %s21, 0
        %s241 = smul.addr %s238, 5
        %s242 = sadd.s32 %s240, %s241
        %s243 = smul.addr %s242, 8
        %s244 = scalar_lea.vmem %s2, %s243
      $region40: #{ground_line_point_decode.1} parent=35 // pred_fallthru
        _
    $region36: #{ground_line_point_decode.1} parent=5 // pred_fallthru
      _
  $region6: #{ground_line_point_decode.1} parent=0 // loop_footer
    %s13 = sadd.s32 1, %s9
  $region7: #{ground_line_point_decode.1} parent=0 // loop_footer_branch
    %8 = sbr.rel target = $region3
  $region8: #{ground_line_point_decode.1} parent=0 // loop_exit
    _

</llo_original>
